<compile_context>
chip_gen: v5e
topology: v5e:2x2
jax: 0.10.0
libtpu: 0.0.40
codegen_flags: <defaults>
</compile_context>

<pallas_src>
import functools

import jax
import jax.numpy as jnp
from jax.experimental import pallas as pl
from jax.experimental.pallas import tpu as pltpu


# ---------------------------------------------------------------------------
# Pallas kernel: fused T-step LIF rollout (weights resident, state in scratch)
# ---------------------------------------------------------------------------
def _lif_scan_kernel(x_ref, u0_ref, z0_ref, wt_ref, rt_ref,
                     d_ref, omd_ref, b_ref,
                     z_out_ref, u_out_ref,
                     u_sc, z_sc, *, thr):
    """One (batch_block, timestep) grid point of the fused LIF rollout."""
    t = pl.program_id(1)

    # Load the carried state from the module's initial state at t == 0.
    @pl.when(t == 0)
    def _():
        u_sc[...] = u0_ref[...]
        z_sc[...] = z0_ref[...]

    # bf16 MXU matmuls with f32 accumulation. z_{t-1} is exactly 0/1 so its
    # bf16 cast is lossless; x/W pick up bf16 rounding (fine for SNNs).
    x_b = x_ref[0].astype(wt_ref.dtype)                 # (bt, I)
    z_prev = z_sc[...].astype(rt_ref.dtype)             # (bt, O)

    soma = jnp.dot(x_b, wt_ref[...], preferred_element_type=jnp.float32)
    soma = soma + jnp.dot(z_prev, rt_ref[...], preferred_element_type=jnp.float32)

    # u_t = decay*u_{t-1} + (1-decay)*(soma + bias)
    #     = decay*u_{t-1} + (1-decay)*soma + (1-decay)*bias   (b_ref pre-scaled)
    u_t = d_ref[...] * u_sc[...] + omd_ref[...] * soma + b_ref[...]

    # heaviside(u_t - thr, 0): 1 iff u_t - thr > 0; then u_t *= (1 - z_t)
    fired = u_t > thr
    z_t = jnp.where(fired, 1.0, 0.0).astype(jnp.float32)
    u_next = jnp.where(fired, 0.0, u_t)

    u_sc[...] = u_next
    z_sc[...] = z_t
    z_out_ref[0] = z_t
    u_out_ref[0] = u_next


# ---------------------------------------------------------------------------
# Wrapper: full rollout over T timesteps in one pallas_call
# ---------------------------------------------------------------------------
def lif_scan(x_seq, u0, z0, weight, recurrent, bias, decay, *, thr=1.0,
             batch_tile=None, matmul_dtype=jnp.bfloat16):
    """Fused T-step LIF rollout. Returns (z_seq, u_seq), each (T, B, O)."""
    T, B, I = x_seq.shape
    O = weight.shape[0]
    assert weight.shape == (O, I)
    assert recurrent.shape == (O, O)
    assert u0.shape == (B, O) and z0.shape == (B, O)

    # One-time glue hoisted out of the fused time loop: pre-transpose so the
    # in-kernel matmuls are plain `x @ W_T` with out_features lane-dense, and
    # cast the weights to bf16 for the MXU.
    w_t = weight.T.astype(matmul_dtype)                  # (I, O)
    r_t = recurrent.T.astype(matmul_dtype)               # (O, O)

    decay_row = decay.astype(jnp.float32).reshape(1, O)  # (1, O)
    omd_row = 1.0 - decay_row                            # (1, O)
    b_row = omd_row * bias.astype(jnp.float32).reshape(1, O)   # pre-scaled bias

    x_seq = x_seq.astype(jnp.float32)
    u0 = u0.astype(jnp.float32)
    z0 = z0.astype(jnp.float32)

    # Batch blocks are fully independent -> "parallel" grid axis (v7x 2-TC).
    if batch_tile is None:
        batch_tile = 128 if (B > 128 and B % 128 == 0) else B
    bt = batch_tile
    assert B % bt == 0, "batch must be divisible by the batch tile"
    n_b = B // bt

    # TODO(synk): for very large O (bf16 R^T no longer fits v7x's 64 MiB VMEM),
    # tile the out_features axis and double-buffer the z state scratch.

    kernel = functools.partial(_lif_scan_kernel, thr=float(thr))

    wbytes = jnp.dtype(matmul_dtype).itemsize
    vmem_est = (2 * (I * O + O * O) * wbytes      # W^T, R^T (2 buffers each)
                + 2 * bt * O * 4                  # u/z carried scratch
                + 2 * 2 * bt * O * 4              # u0/z0 blocks
                + 2 * bt * I * 4                  # x blocks (double buffered)
                + 2 * 2 * bt * O * 4              # z/u output blocks
                + 6 * O * 4 + (1 << 20))          # rows + headroom
    vmem_limit = int(min(64 * 1024 * 1024, max(32 * 1024 * 1024, 2 * vmem_est)))

    cost = pl.CostEstimate(
        flops=2 * T * B * O * (I + O),
        transcendentals=0,
        bytes_accessed=int(4 * T * B * I + 2 * 4 * B * O
                           + wbytes * (I * O + O * O) + 3 * 4 * O
                           + 2 * 4 * T * B * O),
    )

    z_seq, u_seq = pl.pallas_call(
        kernel,
        out_shape=(
            jax.ShapeDtypeStruct((T, B, O), jnp.float32),   # z_t per step
            jax.ShapeDtypeStruct((T, B, O), jnp.float32),   # u_t per step
        ),
        grid_spec=pltpu.PrefetchScalarGridSpec(
            num_scalar_prefetch=0,
            grid=(n_b, T),
            in_specs=[
                pl.BlockSpec((1, bt, I), lambda b, t: (t, b, 0)),   # x_t
                pl.BlockSpec((bt, O), lambda b, t: (b, 0)),         # u0
                pl.BlockSpec((bt, O), lambda b, t: (b, 0)),         # z0
                pl.BlockSpec((I, O), lambda b, t: (0, 0)),          # W^T (resident)
                pl.BlockSpec((O, O), lambda b, t: (0, 0)),          # R^T (resident)
                pl.BlockSpec((1, O), lambda b, t: (0, 0)),          # decay
                pl.BlockSpec((1, O), lambda b, t: (0, 0)),          # 1 - decay
                pl.BlockSpec((1, O), lambda b, t: (0, 0)),          # (1-decay)*bias
            ],
            out_specs=[
                pl.BlockSpec((1, bt, O), lambda b, t: (t, b, 0)),   # z_seq
                pl.BlockSpec((1, bt, O), lambda b, t: (t, b, 0)),   # u_seq
            ],
            scratch_shapes=[
                pltpu.VMEM((bt, O), jnp.float32),   # carried u
                pltpu.VMEM((bt, O), jnp.float32),   # carried z
            ],
        ),
        compiler_params=pltpu.CompilerParams(
            dimension_semantics=("parallel", "arbitrary"),
            vmem_limit_bytes=vmem_limit),
        cost_estimate=cost,
    )(x_seq, u0, z0, w_t, r_t, decay_row, omd_row, b_row)

    return z_seq, u_seq


def lif_forward(input_tensor, states, weight, recurrent, bias, decay, *, thr=1.0):
    """Single-step interface matching the PyTorch module: (z_t, (u_t, z_t))."""
    u_tm1, z_tm1 = states
    z_seq, u_seq = lif_scan(input_tensor[None], u_tm1, z_tm1, weight, recurrent,
                            bias, decay, thr=thr)
    z_t, u_t = z_seq[0], u_seq[0]
    return z_t, (u_t, z_t)


# ---------------------------------------------------------------------------
# Deterministic parameter construction (mirrors reset_parameters())
# ---------------------------------------------------------------------------
def init_lif_params(key, in_features, out_features, tau_u_range=(5.0, 25.0),
                    dt=1.0):
    k_w, k_r, k_tau = jax.random.split(key, 3)

    bound = (1.0 / in_features) ** 0.5
    weight = jax.random.uniform(k_w, (out_features, in_features),
                                minval=-bound, maxval=bound, dtype=jnp.float32)
    bias = jnp.zeros((out_features,), jnp.float32)

    g = jax.random.normal(k_r, (out_features, out_features), jnp.float32)
    q, r = jnp.linalg.qr(g)
    q = q * jnp.sign(jnp.diag(r))[None, :]
    recurrent = q.astype(jnp.float32)

    tau = jax.random.uniform(k_tau, (out_features,), minval=tau_u_range[0],
                             maxval=tau_u_range[1], dtype=jnp.float32)
    decay = jnp.exp(-dt / tau)
    return weight, recurrent, bias, decay


# ---------------------------------------------------------------------------
# Reference (plain JAX scan, same bf16-matmul numerics) for sanity check
# ---------------------------------------------------------------------------
def lif_scan_ref(x_seq, u0, z0, weight, recurrent, bias, decay, thr=1.0,
                 matmul_dtype=jnp.bfloat16):
    w_t = weight.T.astype(matmul_dtype)
    r_t = recurrent.T.astype(matmul_dtype)
    decay = decay.astype(jnp.float32)
    omd = 1.0 - decay
    b_scaled = omd * bias.astype(jnp.float32)

    def step(carry, x):
        u, z = carry
        soma = jnp.dot(x.astype(matmul_dtype), w_t,
                       preferred_element_type=jnp.float32)
        soma = soma + jnp.dot(z.astype(matmul_dtype), r_t,
                              preferred_element_type=jnp.float32)
        u_t = decay * u + omd * soma + b_scaled
        z_t = jnp.where(u_t > thr, 1.0, 0.0).astype(jnp.float32)
        u_t = jnp.where(u_t > thr, 0.0, u_t)
        return (u_t, z_t), (z_t, u_t)

    _, (z_seq, u_seq) = jax.lax.scan(step, (u0, z0), x_seq)
    return z_seq, u_seq


if __name__ == "__main__":
    T, B, IN, OUT = 8, 8, 64, 128
    key = jax.random.PRNGKey(0)
    k_p, k_b, k_x, k_u, k_z = jax.random.split(key, 5)

    weight, recurrent, _, decay = init_lif_params(k_p, IN, OUT)
    bias = 0.05 * jax.random.normal(k_b, (OUT,), jnp.float32)  # exercise bias path

    x_seq = jax.random.normal(k_x, (T, B, IN), jnp.float32)
    u0 = 0.5 * jax.random.normal(k_u, (B, OUT), jnp.float32)
    z0 = (jax.random.uniform(k_z, (B, OUT)) > 0.8).astype(jnp.float32)

    run = jax.jit(functools.partial(lif_scan, thr=1.0))
    z_seq, u_seq = run(x_seq, u0, z0, weight, recurrent, bias, decay)
    jax.block_until_ready((z_seq, u_seq))

    z_ref, u_ref = lif_scan_ref(x_seq, u0, z0, weight, recurrent, bias, decay,
                                thr=1.0)
    assert z_seq.shape == (T, B, OUT) and u_seq.shape == (T, B, OUT)
    assert jnp.allclose(z_seq, z_ref, atol=1e-4), "z sequence mismatch"
    assert jnp.allclose(u_seq, u_ref, atol=1e-4), "u sequence mismatch"

    # Single-step module interface: (z_t, (u_t, z_t))
    z1, (u1, z1b) = lif_forward(x_seq[0], (u0, z0), weight, recurrent, bias,
                                decay, thr=1.0)
    jax.block_until_ready((z1, u1, z1b))
    assert jnp.allclose(z1, z_ref[0], atol=1e-4), "single-step z mismatch"
    assert jnp.allclose(u1, u_ref[0], atol=1e-4), "single-step u mismatch"

    print("KERNEL_OK")
</pallas_src>

<mosaic_0001>
module attributes {stable_mosaic.version = 11 : i64} {
  func.func @_lif_scan_kernel(%arg0: i32, %arg1: i32, %arg2: memref<1x8x64xf32, #tpu.memory_space<vmem>>, %arg3: memref<8x128xf32, #tpu.memory_space<vmem>>, %arg4: memref<8x128xf32, #tpu.memory_space<vmem>>, %arg5: memref<64x128xbf16, #tpu.memory_space<vmem>>, %arg6: memref<128x128xbf16, #tpu.memory_space<vmem>>, %arg7: memref<1x128xf32, #tpu.memory_space<vmem>>, %arg8: memref<1x128xf32, #tpu.memory_space<vmem>>, %arg9: memref<1x128xf32, #tpu.memory_space<vmem>>, %arg10: memref<1x8x128xf32, #tpu.memory_space<vmem>>, %arg11: memref<1x8x128xf32, #tpu.memory_space<vmem>>, %arg12: memref<8x128xf32, #tpu.memory_space<vmem>>, %arg13: memref<8x128xf32, #tpu.memory_space<vmem>>) attributes {dimension_semantics = [#tpu.dimension_semantics<parallel>, #tpu.dimension_semantics<arbitrary>], iteration_bounds = array<i64: 1, 8>, scalar_prefetch = 0 : i64, scratch_operands = 2 : i64, tpu.core_type = #tpu.core_type<tc>, window_params = [{transform_indices = @transform_0, window_bounds = array<i64: 1, 8, 64>}, {transform_indices = @transform_1, window_bounds = array<i64: 8, 128>}, {transform_indices = @transform_2, window_bounds = array<i64: 8, 128>}, {pipeline_mode = #tpu.pipeline_mode<synchronous>, transform_indices = @transform_3, window_bounds = array<i64: 64, 128>}, {pipeline_mode = #tpu.pipeline_mode<synchronous>, transform_indices = @transform_4, window_bounds = array<i64: 128, 128>}, {pipeline_mode = #tpu.pipeline_mode<synchronous>, transform_indices = @transform_5, window_bounds = array<i64: 1, 128>}, {pipeline_mode = #tpu.pipeline_mode<synchronous>, transform_indices = @transform_6, window_bounds = array<i64: 1, 128>}, {pipeline_mode = #tpu.pipeline_mode<synchronous>, transform_indices = @transform_7, window_bounds = array<i64: 1, 128>}, {transform_indices = @transform_8, window_bounds = array<i64: 1, 8, 128>}, {transform_indices = @transform_9, window_bounds = array<i64: 1, 8, 128>}]} {
    %c0_i32 = arith.constant 0 : i32
    %0 = arith.cmpi eq, %arg1, %c0_i32 : i32
    %1 = arith.extui %0 : i1 to i32
    %c0_i32_0 = arith.constant 0 : i32
    %2 = arith.cmpi ne, %1, %c0_i32_0 : i32
    scf.if %2 {
      %c0_32 = arith.constant 0 : index
      %c0_33 = arith.constant 0 : index
      %39 = vector.load %arg3[%c0_32, %c0_33] : memref<8x128xf32, #tpu.memory_space<vmem>>, vector<8x128xf32>
      %c0_34 = arith.constant 0 : index
      %c0_35 = arith.constant 0 : index
      %40 = vector.load %arg12[%c0_34, %c0_35] : memref<8x128xf32, #tpu.memory_space<vmem>>, vector<8x128xf32>
      tpu.vector_store %arg12[%c0_34, %c0_35], %39 {strides = array<i32>} : memref<8x128xf32, #tpu.memory_space<vmem>>, vector<8x128xf32>,
      %c0_36 = arith.constant 0 : index
      %c0_37 = arith.constant 0 : index
      %41 = vector.load %arg4[%c0_36, %c0_37] : memref<8x128xf32, #tpu.memory_space<vmem>>, vector<8x128xf32>
      %c0_38 = arith.constant 0 : index
      %c0_39 = arith.constant 0 : index
      %42 = vector.load %arg13[%c0_38, %c0_39] : memref<8x128xf32, #tpu.memory_space<vmem>>, vector<8x128xf32>
      tpu.vector_store %arg13[%c0_38, %c0_39], %41 {strides = array<i32>} : memref<8x128xf32, #tpu.memory_space<vmem>>, vector<8x128xf32>,
    } else {
    }
    %c0 = arith.constant 0 : index
    %c0_1 = arith.constant 0 : index
    %c0_2 = arith.constant 0 : index
    %3 = vector.load %arg2[%c0, %c0_1, %c0_2] : memref<1x8x64xf32, #tpu.memory_space<vmem>>, vector<1x8x64xf32>
    %4 = vector.shape_cast %3 : vector<1x8x64xf32> to vector<8x64xf32>
    %5 = arith.truncf %4 : vector<8x64xf32> to vector<8x64xbf16>
    %c0_3 = arith.constant 0 : index
    %c0_4 = arith.constant 0 : index
    %6 = vector.load %arg13[%c0_3, %c0_4] : memref<8x128xf32, #tpu.memory_space<vmem>>, vector<8x128xf32>
    %7 = arith.truncf %6 : vector<8x128xf32> to vector<8x128xbf16>
    %c0_5 = arith.constant 0 : index
    %c0_6 = arith.constant 0 : index
    %8 = vector.load %arg5[%c0_5, %c0_6] : memref<64x128xbf16, #tpu.memory_space<vmem>>, vector<64x128xbf16>
    %cst = arith.constant dense<0.000000e+00> : vector<8x128xf32>
    %9 = tpu.matmul %5, %8, %cst {dimension_numbers = #tpu.dot_dimension_numbers<[1], [0], [0], [1], [0, 0, 1, 1], [], []>} : vector<8x64xbf16>, vector<64x128xbf16>, vector<8x128xf32> -> vector<8x128xf32>
    %c0_7 = arith.constant 0 : index
    %c0_8 = arith.constant 0 : index
    %10 = vector.load %arg6[%c0_7, %c0_8] : memref<128x128xbf16, #tpu.memory_space<vmem>>, vector<128x128xbf16>
    %cst_9 = arith.constant dense<0.000000e+00> : vector<8x128xf32>
    %11 = tpu.matmul %7, %10, %cst_9 {dimension_numbers = #tpu.dot_dimension_numbers<[1], [0], [0], [1], [0, 0, 1, 1], [], []>} : vector<8x128xbf16>, vector<128x128xbf16>, vector<8x128xf32> -> vector<8x128xf32>
    %12 = arith.addf %9, %11 : vector<8x128xf32>
    %c0_10 = arith.constant 0 : index
    %c0_11 = arith.constant 0 : index
    %13 = vector.load %arg7[%c0_10, %c0_11] : memref<1x128xf32, #tpu.memory_space<vmem>>, vector<1x128xf32>
    %c0_12 = arith.constant 0 : index
    %c0_13 = arith.constant 0 : index
    %14 = vector.load %arg12[%c0_12, %c0_13] : memref<8x128xf32, #tpu.memory_space<vmem>>, vector<8x128xf32>
    %15 = vector.broadcast %13 : vector<1x128xf32> to vector<8x128xf32>
    %16 = arith.mulf %15, %14 : vector<8x128xf32>
    %c0_14 = arith.constant 0 : index
    %c0_15 = arith.constant 0 : index
    %17 = vector.load %arg8[%c0_14, %c0_15] : memref<1x128xf32, #tpu.memory_space<vmem>>, vector<1x128xf32>
    %18 = vector.broadcast %17 : vector<1x128xf32> to vector<8x128xf32>
    %19 = arith.mulf %18, %12 : vector<8x128xf32>
    %20 = arith.addf %16, %19 : vector<8x128xf32>
    %c0_16 = arith.constant 0 : index
    %c0_17 = arith.constant 0 : index
    %21 = vector.load %arg9[%c0_16, %c0_17] : memref<1x128xf32, #tpu.memory_space<vmem>>, vector<1x128xf32>
    %22 = vector.broadcast %21 : vector<1x128xf32> to vector<8x128xf32>
    %23 = arith.addf %20, %22 : vector<8x128xf32>
    %cst_18 = arith.constant 1.000000e+00 : f32
    %24 = vector.broadcast %cst_18 : f32 to vector<8x128xf32>
    %25 = arith.cmpf ogt, %23, %24 : vector<8x128xf32>
    %cst_19 = arith.constant 1.000000e+00 : f32
    %cst_20 = arith.constant 0.000000e+00 : f32
    %26 = vector.broadcast %cst_19 : f32 to vector<8x128xf32>
    %27 = vector.broadcast %cst_20 : f32 to vector<8x128xf32>
    %28 = arith.select %25, %26, %27 : vector<8x128xi1>, vector<8x128xf32>
    %cst_21 = arith.constant 0.000000e+00 : f32
    %29 = vector.broadcast %cst_21 : f32 to vector<8x128xf32>
    %30 = arith.select %25, %29, %23 : vector<8x128xi1>, vector<8x128xf32>
    %c0_22 = arith.constant 0 : index
    %c0_23 = arith.constant 0 : index
    %31 = vector.load %arg12[%c0_22, %c0_23] : memref<8x128xf32, #tpu.memory_space<vmem>>, vector<8x128xf32>
    tpu.vector_store %arg12[%c0_22, %c0_23], %30 {strides = array<i32>} : memref<8x128xf32, #tpu.memory_space<vmem>>, vector<8x128xf32>,
    %c0_24 = arith.constant 0 : index
    %c0_25 = arith.constant 0 : index
    %32 = vector.load %arg13[%c0_24, %c0_25] : memref<8x128xf32, #tpu.memory_space<vmem>>, vector<8x128xf32>
    tpu.vector_store %arg13[%c0_24, %c0_25], %28 {strides = array<i32>} : memref<8x128xf32, #tpu.memory_space<vmem>>, vector<8x128xf32>,
    %c0_26 = arith.constant 0 : index
    %c0_27 = arith.constant 0 : index
    %c0_28 = arith.constant 0 : index
    %33 = vector.load %arg10[%c0_26, %c0_27, %c0_28] : memref<1x8x128xf32, #tpu.memory_space<vmem>>, vector<1x8x128xf32>
    %34 = vector.shape_cast %33 : vector<1x8x128xf32> to vector<8x128xf32>
    %35 = vector.shape_cast %28 : vector<8x128xf32> to vector<1x8x128xf32>
    tpu.vector_store %arg10[%c0_26, %c0_27, %c0_28], %35 {strides = array<i32>} : memref<1x8x128xf32, #tpu.memory_space<vmem>>, vector<1x8x128xf32>,
    %c0_29 = arith.constant 0 : index
    %c0_30 = arith.constant 0 : index
    %c0_31 = arith.constant 0 : index
    %36 = vector.load %arg11[%c0_29, %c0_30, %c0_31] : memref<1x8x128xf32, #tpu.memory_space<vmem>>, vector<1x8x128xf32>
    %37 = vector.shape_cast %36 : vector<1x8x128xf32> to vector<8x128xf32>
    %38 = vector.shape_cast %30 : vector<8x128xf32> to vector<1x8x128xf32>
    tpu.vector_store %arg11[%c0_29, %c0_30, %c0_31], %38 {strides = array<i32>} : memref<1x8x128xf32, #tpu.memory_space<vmem>>, vector<1x8x128xf32>,
    return
  }
  func.func @transform_0(%arg0: i32, %arg1: i32) -> (i32, i32, i32) {
    %c0_i32 = arith.constant 0 : i32
    %c0_i32_0 = arith.constant 0 : i32
    return %arg1, %arg0, %c0_i32 : i32, i32, i32
  }
  func.func @transform_1(%arg0: i32, %arg1: i32) -> (i32, i32) {
    %c0_i32 = arith.constant 0 : i32
    %c0_i32_0 = arith.constant 0 : i32
    return %arg0, %c0_i32 : i32, i32
  }
  func.func @transform_2(%arg0: i32, %arg1: i32) -> (i32, i32) {
    %c0_i32 = arith.constant 0 : i32
    %c0_i32_0 = arith.constant 0 : i32
    return %arg0, %c0_i32 : i32, i32
  }
  func.func @transform_3(%arg0: i32, %arg1: i32) -> (i32, i32) {
    %c0_i32 = arith.constant 0 : i32
    %c0_i32_0 = arith.constant 0 : i32
    %c0_i32_1 = arith.constant 0 : i32
    return %c0_i32, %c0_i32_0 : i32, i32
  }
  func.func @transform_4(%arg0: i32, %arg1: i32) -> (i32, i32) {
    %c0_i32 = arith.constant 0 : i32
    %c0_i32_0 = arith.constant 0 : i32
    %c0_i32_1 = arith.constant 0 : i32
    return %c0_i32, %c0_i32_0 : i32, i32
  }
  func.func @transform_5(%arg0: i32, %arg1: i32) -> (i32, i32) {
    %c0_i32 = arith.constant 0 : i32
    %c0_i32_0 = arith.constant 0 : i32
    %c0_i32_1 = arith.constant 0 : i32
    return %c0_i32, %c0_i32_0 : i32, i32
  }
  func.func @transform_6(%arg0: i32, %arg1: i32) -> (i32, i32) {
    %c0_i32 = arith.constant 0 : i32
    %c0_i32_0 = arith.constant 0 : i32
    %c0_i32_1 = arith.constant 0 : i32
    return %c0_i32, %c0_i32_0 : i32, i32
  }
  func.func @transform_7(%arg0: i32, %arg1: i32) -> (i32, i32) {
    %c0_i32 = arith.constant 0 : i32
    %c0_i32_0 = arith.constant 0 : i32
    %c0_i32_1 = arith.constant 0 : i32
    return %c0_i32, %c0_i32_0 : i32, i32
  }
  func.func @transform_8(%arg0: i32, %arg1: i32) -> (i32, i32, i32) {
    %c0_i32 = arith.constant 0 : i32
    %c0_i32_0 = arith.constant 0 : i32
    return %arg1, %arg0, %c0_i32 : i32, i32, i32
  }
  func.func @transform_9(%arg0: i32, %arg1: i32) -> (i32, i32, i32) {
    %c0_i32 = arith.constant 0 : i32
    %c0_i32_0 = arith.constant 0 : i32
    return %arg1, %arg0, %c0_i32 : i32, i32, i32
  }
}

</mosaic_0001>

<llo_original>
// kernel: lif_scan.1
$region0: #{lif_scan.1}
  #allocation0 [shape = 'u32[]', space=smem, size = 0x4, offset = 0x4, fixed_abs, tag = 'smem constant byte address 0x4 - core index']
  #allocation1 [shape = 'u32[72,128]{1,0:T(1,128)}', space=vmem, size = 0x9000, scoped, tag = 'internal scratch']
  #allocation2 [shape = 'f32[8,128]{1,0:T(8,128)}', space=vmem, size = 0x1000, scoped, tag = 'scratch operand']
  #allocation3 [shape = 'f32[8,128]{1,0:T(8,128)}', space=vmem, size = 0x1000, scoped, tag = 'scratch operand']
  %s0 = inlined_call_operand.vmem [shape: f32[8,8,64], index: 0, kind: input, shape index: {}]
  %s1 = inlined_call_operand.vmem [shape: f32[8,128], index: 1, kind: input, shape index: {}]
  %s2 = inlined_call_operand.vmem [shape: f32[8,128], index: 2, kind: input, shape index: {}]
  %s3 = inlined_call_operand.vmem [shape: bf16[64,128], index: 3, kind: input, shape index: {}]
  %s4 = inlined_call_operand.vmem [shape: bf16[128,128], index: 4, kind: input, shape index: {}]
  %s5 = inlined_call_operand.vmem [shape: f32[1,128], index: 5, kind: input, shape index: {}]
  %s6 = inlined_call_operand.vmem [shape: f32[1,128], index: 6, kind: input, shape index: {}]
  %s7 = inlined_call_operand.vmem [shape: f32[1,128], index: 7, kind: input, shape index: {}]
  %s8 = inlined_call_operand.hbm [shape: f32[8,8,128], index: 8, kind: output, shape index: {0}]
  %s9 = inlined_call_operand.hbm [shape: f32[8,8,128], index: 9, kind: output, shape index: {1}]
  %10 = xla_tuple %s8, %s9
  %s11 = sld [smem:[#allocation0]]
  $region77: #{lif_scan.1} parent=0
    _
  %s13 = ssub.s32 1, %s11
  %s14 = scalar_select 0, %s13, %s11
  $region1: #{lif_scan.1} parent=0
    #allocation4 [shape = 'u8[8192]{0}', space=vmem, size = 0x2000, scoped, tag = 'output window, operand 0']
    #allocation5 [shape = 's32[2]{0}', space=sflag, size = 0x8, scoped, tag = 'scoped memory for lif_scan.1']
    #allocation6 [shape = 'u8[8192]{0}', space=vmem, size = 0x2000, scoped, tag = 'output window, operand 1']
    #allocation7 [shape = 's32[2]{0}', space=sflag, size = 0x8, scoped, tag = 'scoped memory for lif_scan.1']
    %15 = vsyncpa [#allocation5], 0
    %s16 = scalar_lea.sflag [#allocation5], 1
    %17 = vsyncpa %s16, 0
    %18 = vsyncpa [#allocation7], 0
    %s19 = scalar_lea.sflag [#allocation7], 1
    %20 = vsyncpa %s19, 0
    loop: start=0, step=1, limit=10
    $region2: #{lif_scan.1} parent=1 // loop_pre_header
      _
    $region3: #{lif_scan.1} parent=1 // loop_header
      %s22 = sphi 0, %s26
      %p23 = scmp.ge.s32.totalorder %s22, 10
      %s29 = sphi 0, %s41
      %s30 = sphi 0, %s37
      %s31 = sphi 0, %s29
      %s32 = sphi 0, %s30
      %s33 = sphi 0, %s31
      %s34 = sphi 0, %s32
      %s46 = sphi 0, %s48
      %s49 = sphi 0, %s46
      %s50 = sphi 0, %s49
      %s66 = sphi 0, %s50
      %s72 = sphi 0, %s74
      %s75 = sphi 0, %s72
      %s76 = sphi 0, %s75
      %s92 = sphi 0, %s76
      %s98 = sphi 0, %s100
      %s101 = sphi 0, %s98
      %s102 = sphi 0, %s101
      %s118 = sphi 0, %s102
      %s122 = sphi 0, %s122
      %s124 = sphi 0, %s122
      %s125 = sphi 0, %s124
      %s139 = sphi 0, %s125
      %s143 = sphi 0, %s143
      %s145 = sphi 0, %s143
      %s146 = sphi 0, %s145
      %s160 = sphi 0, %s146
      %s164 = sphi 0, %s164
      %s166 = sphi 0, %s164
      %s167 = sphi 0, %s166
      %s181 = sphi 0, %s167
      %s185 = sphi 0, %s185
      %s187 = sphi 0, %s185
      %s188 = sphi 0, %s187
      %s202 = sphi 0, %s188
      %s206 = sphi 0, %s206
      %s208 = sphi 0, %s206
      %s209 = sphi 0, %s208
      %s223 = sphi 0, %s209
      %s231 = sphi 0, %s233
      %s234 = sphi 0, %s231
      %s235 = sphi 0, %s234
      %s251 = sphi 0, %s235
      %s259 = sphi 0, %s261
      %s262 = sphi 0, %s259
      %s263 = sphi 0, %s262
      %s279 = sphi 0, %s263
    $region4: #{lif_scan.1} parent=1 // loop_header_branch
      %25 = sbr.rel (%p23) target = $region8
    $region5: #{lif_scan.1} parent=1 // loop_body
      %s27 = ssub.s32 %s22, 1
      %s28 = ssub.s32 %s22, 2
      %s35 = sadd.s32 1, %s30
      %p36 = scmp.ge.s32.totalorder %s35, 8
      %s37 = scalar_select %p36, 0, %s35
      %s38 = sadd.s32 1, %s29
      %s39 = scalar_select %p36, %s38, %s29
      %p40 = scmp.ge.s32.totalorder %s39, 1
      %s41 = scalar_select %p40, 0, %s39
      %s42 = ssub.s32 %s30, %s37
      %s43 = ssub.s32 %s29, %s41
      %s44 = sor.u32 %s42, %s43
      %p45 = scmp.eq.s32.totalorder %s44, 0
      %s47 = sadd.s32 %s46, 1
      %s48 = scalar_select %p45, %s46, %s47
      %p51 = pneg %p45
      %p52 = scmp.eq.s32.totalorder %s22, 7
      %p53 = por %p51, %p52
      %p54 = scmp.ne.s32.totalorder %s46, %s49
      %p55 = scmp.eq.s32.totalorder %s22, 0
      %p56 = por %p54, %p55
      %p57 = scmp.ne.s32.totalorder %s46, %s49
      %p58 = scmp.eq.s32.totalorder %s27, 7
      %p59 = por %p57, %p58
      %p60 = scmp.ne.s32.totalorder %s49, %s50
      %p61 = scmp.eq.s32.totalorder %s27, 0
      %p62 = por %p60, %p61
      %p63 = scmp.ne.s32.totalorder %s49, %s50
      %p64 = scmp.eq.s32.totalorder %s28, 7
      %p65 = por %p63, %p64
      %p67 = scmp.ne.s32.totalorder %s50, %s66
      %p68 = scmp.eq.s32.totalorder %s28, 0
      %p69 = por %p67, %p68
      %s70 = ssub.s32 %s29, %s41
      %p71 = scmp.eq.s32.totalorder %s70, 0
      %s73 = sadd.s32 %s72, 1
      %s74 = scalar_select %p71, %s72, %s73
      %p77 = pneg %p71
      %p78 = scmp.eq.s32.totalorder %s22, 7
      %p79 = por %p77, %p78
      %p80 = scmp.ne.s32.totalorder %s72, %s75
      %p81 = scmp.eq.s32.totalorder %s22, 0
      %p82 = por %p80, %p81
      %p83 = scmp.ne.s32.totalorder %s72, %s75
      %p84 = scmp.eq.s32.totalorder %s27, 7
      %p85 = por %p83, %p84
      %p86 = scmp.ne.s32.totalorder %s75, %s76
      %p87 = scmp.eq.s32.totalorder %s27, 0
      %p88 = por %p86, %p87
      %p89 = scmp.ne.s32.totalorder %s75, %s76
      %p90 = scmp.eq.s32.totalorder %s28, 7
      %p91 = por %p89, %p90
      %p93 = scmp.ne.s32.totalorder %s76, %s92
      %p94 = scmp.eq.s32.totalorder %s28, 0
      %p95 = por %p93, %p94
      %s96 = ssub.s32 %s29, %s41
      %p97 = scmp.eq.s32.totalorder %s96, 0
      %s99 = sadd.s32 %s98, 1
      %s100 = scalar_select %p97, %s98, %s99
      %p103 = pneg %p97
      %p104 = scmp.eq.s32.totalorder %s22, 7
      %p105 = por %p103, %p104
      %p106 = scmp.ne.s32.totalorder %s98, %s101
      %p107 = scmp.eq.s32.totalorder %s22, 0
      %p108 = por %p106, %p107
      %p109 = scmp.ne.s32.totalorder %s98, %s101
      %p110 = scmp.eq.s32.totalorder %s27, 7
      %p111 = por %p109, %p110
      %p112 = scmp.ne.s32.totalorder %s101, %s102
      %p113 = scmp.eq.s32.totalorder %s27, 0
      %p114 = por %p112, %p113
      %p115 = scmp.ne.s32.totalorder %s101, %s102
      %p116 = scmp.eq.s32.totalorder %s28, 7
      %p117 = por %p115, %p116
      %p119 = scmp.ne.s32.totalorder %s102, %s118
      %p120 = scmp.eq.s32.totalorder %s28, 0
      %p121 = por %p119, %p120
      %s123 = sadd.s32 %s122, 1
      %p126 = scmp.eq.s32.totalorder %s22, 7
      %p127 = scmp.ne.s32.totalorder %s122, %s124
      %p128 = scmp.eq.s32.totalorder %s22, 0
      %p129 = por %p127, %p128
      %p130 = scmp.ne.s32.totalorder %s122, %s124
      %p131 = scmp.eq.s32.totalorder %s27, 7
      %p132 = por %p130, %p131
      %p133 = scmp.ne.s32.totalorder %s124, %s125
      %p134 = scmp.eq.s32.totalorder %s27, 0
      %p135 = por %p133, %p134
      %p136 = scmp.ne.s32.totalorder %s124, %s125
      %p137 = scmp.eq.s32.totalorder %s28, 7
      %p138 = por %p136, %p137
      %p140 = scmp.ne.s32.totalorder %s125, %s139
      %p141 = scmp.eq.s32.totalorder %s28, 0
      %p142 = por %p140, %p141
      %s144 = sadd.s32 %s143, 1
      %p147 = scmp.eq.s32.totalorder %s22, 7
      %p148 = scmp.ne.s32.totalorder %s143, %s145
      %p149 = scmp.eq.s32.totalorder %s22, 0
      %p150 = por %p148, %p149
      %p151 = scmp.ne.s32.totalorder %s143, %s145
      %p152 = scmp.eq.s32.totalorder %s27, 7
      %p153 = por %p151, %p152
      %p154 = scmp.ne.s32.totalorder %s145, %s146
      %p155 = scmp.eq.s32.totalorder %s27, 0
      %p156 = por %p154, %p155
      %p157 = scmp.ne.s32.totalorder %s145, %s146
      %p158 = scmp.eq.s32.totalorder %s28, 7
      %p159 = por %p157, %p158
      %p161 = scmp.ne.s32.totalorder %s146, %s160
      %p162 = scmp.eq.s32.totalorder %s28, 0
      %p163 = por %p161, %p162
      %s165 = sadd.s32 %s164, 1
      %p168 = scmp.eq.s32.totalorder %s22, 7
      %p169 = scmp.ne.s32.totalorder %s164, %s166
      %p170 = scmp.eq.s32.totalorder %s22, 0
      %p171 = por %p169, %p170
      %p172 = scmp.ne.s32.totalorder %s164, %s166
      %p173 = scmp.eq.s32.totalorder %s27, 7
      %p174 = por %p172, %p173
      %p175 = scmp.ne.s32.totalorder %s166, %s167
      %p176 = scmp.eq.s32.totalorder %s27, 0
      %p177 = por %p175, %p176
      %p178 = scmp.ne.s32.totalorder %s166, %s167
      %p179 = scmp.eq.s32.totalorder %s28, 7
      %p180 = por %p178, %p179
      %p182 = scmp.ne.s32.totalorder %s167, %s181
      %p183 = scmp.eq.s32.totalorder %s28, 0
      %p184 = por %p182, %p183
      %s186 = sadd.s32 %s185, 1
      %p189 = scmp.eq.s32.totalorder %s22, 7
      %p190 = scmp.ne.s32.totalorder %s185, %s187
      %p191 = scmp.eq.s32.totalorder %s22, 0
      %p192 = por %p190, %p191
      %p193 = scmp.ne.s32.totalorder %s185, %s187
      %p194 = scmp.eq.s32.totalorder %s27, 7
      %p195 = por %p193, %p194
      %p196 = scmp.ne.s32.totalorder %s187, %s188
      %p197 = scmp.eq.s32.totalorder %s27, 0
      %p198 = por %p196, %p197
      %p199 = scmp.ne.s32.totalorder %s187, %s188
      %p200 = scmp.eq.s32.totalorder %s28, 7
      %p201 = por %p199, %p200
      %p203 = scmp.ne.s32.totalorder %s188, %s202
      %p204 = scmp.eq.s32.totalorder %s28, 0
      %p205 = por %p203, %p204
      %s207 = sadd.s32 %s206, 1
      %p210 = scmp.eq.s32.totalorder %s22, 7
      %p211 = scmp.ne.s32.totalorder %s206, %s208
      %p212 = scmp.eq.s32.totalorder %s22, 0
      %p213 = por %p211, %p212
      %p214 = scmp.ne.s32.totalorder %s206, %s208
      %p215 = scmp.eq.s32.totalorder %s27, 7
      %p216 = por %p214, %p215
      %p217 = scmp.ne.s32.totalorder %s208, %s209
      %p218 = scmp.eq.s32.totalorder %s27, 0
      %p219 = por %p217, %p218
      %p220 = scmp.ne.s32.totalorder %s208, %s209
      %p221 = scmp.eq.s32.totalorder %s28, 7
      %p222 = por %p220, %p221
      %p224 = scmp.ne.s32.totalorder %s209, %s223
      %p225 = scmp.eq.s32.totalorder %s28, 0
      %p226 = por %p224, %p225
      %s227 = ssub.s32 %s30, %s37
      %s228 = ssub.s32 %s29, %s41
      %s229 = sor.u32 %s227, %s228
      %p230 = scmp.eq.s32.totalorder %s229, 0
      %s232 = sadd.s32 %s231, 1
      %s233 = scalar_select %p230, %s231, %s232
      %p236 = pneg %p230
      %p237 = scmp.eq.s32.totalorder %s22, 7
      %p238 = por %p236, %p237
      %p239 = scmp.ne.s32.totalorder %s231, %s234
      %p240 = scmp.eq.s32.totalorder %s22, 0
      %p241 = por %p239, %p240
      %p242 = scmp.ne.s32.totalorder %s231, %s234
      %p243 = scmp.eq.s32.totalorder %s27, 7
      %p244 = por %p242, %p243
      %p245 = scmp.ne.s32.totalorder %s234, %s235
      %p246 = scmp.eq.s32.totalorder %s27, 0
      %p247 = por %p245, %p246
      %p248 = scmp.ne.s32.totalorder %s234, %s235
      %p249 = scmp.eq.s32.totalorder %s28, 7
      %p250 = por %p248, %p249
      %p252 = scmp.ne.s32.totalorder %s235, %s251
      %p253 = scmp.eq.s32.totalorder %s28, 0
      %p254 = por %p252, %p253
      %s255 = ssub.s32 %s30, %s37
      %s256 = ssub.s32 %s29, %s41
      %s257 = sor.u32 %s255, %s256
      %p258 = scmp.eq.s32.totalorder %s257, 0
      %s260 = sadd.s32 %s259, 1
      %s261 = scalar_select %p258, %s259, %s260
      %p264 = pneg %p258
      %p265 = scmp.eq.s32.totalorder %s22, 7
      %p266 = por %p264, %p265
      %p267 = scmp.ne.s32.totalorder %s259, %s262
      %p268 = scmp.eq.s32.totalorder %s22, 0
      %p269 = por %p267, %p268
      %p270 = scmp.ne.s32.totalorder %s259, %s262
      %p271 = scmp.eq.s32.totalorder %s27, 7
      %p272 = por %p270, %p271
      %p273 = scmp.ne.s32.totalorder %s262, %s263
      %p274 = scmp.eq.s32.totalorder %s27, 0
      %p275 = por %p273, %p274
      %p276 = scmp.ne.s32.totalorder %s262, %s263
      %p277 = scmp.eq.s32.totalorder %s28, 7
      %p278 = por %p276, %p277
      %p280 = scmp.ne.s32.totalorder %s263, %s279
      %p281 = scmp.eq.s32.totalorder %s28, 0
      %p282 = por %p280, %p281
      %p283 = scmp.le.s32.totalorder 1, %s22
      %p284 = scmp.lt.s32.totalorder %s22, 9
      %p285 = pnand %p283, %p284
      %p286 = pneg %p285
      // Predicated region
      $region9: #{lif_scan.1} parent=5 // pred_check
        _
      $region10: #{lif_scan.1} parent=5 // pred_check_branch
        %288 = sbr.rel (%p285) target = $region12
      $region11: #{lif_scan.1} parent=5 // pred_region
        %s289 = ssub.s32 %s22, 1
        // Predicated region
        $region13: #{lif_scan.1} parent=11 // pred_check
          %p290 = pneg %p88
        $region14: #{lif_scan.1} parent=11 // pred_check_branch
          %292 = sbr.rel (%p290) target = $region16
        $region15: #{lif_scan.1} parent=11 // pred_region
          %p293 = scmp.lt.s32.totalorder %s31, 0
          %s294 = scalar_select %p293, %s31, 0
          %s295 = smul.addr %s294, 8
          %s296 = scalar_lea.vmem %s1, %s295
        $region16: #{lif_scan.1} parent=11 // pred_fallthru
          _
        // Predicated region
        $region17: #{lif_scan.1} parent=11 // pred_check
          %p297 = pneg %p114
        $region18: #{lif_scan.1} parent=11 // pred_check_branch
          %299 = sbr.rel (%p297) target = $region20
        $region19: #{lif_scan.1} parent=11 // pred_region
          %p300 = scmp.lt.s32.totalorder %s31, 0
          %s301 = scalar_select %p300, %s31, 0
          %s302 = smul.addr %s301, 8
          %s303 = scalar_lea.vmem %s2, %s302
        $region20: #{lif_scan.1} parent=11 // pred_fallthru
          _
        // Predicated region
        $region21: #{lif_scan.1} parent=11 // pred_check
          %p304 = pneg %p135
        $region22: #{lif_scan.1} parent=11 // pred_check_branch
          %306 = sbr.rel (%p304) target = $region24
        $region23: #{lif_scan.1} parent=11 // pred_region
          _
        $region24: #{lif_scan.1} parent=11 // pred_fallthru
          _
        // Predicated region
        $region25: #{lif_scan.1} parent=11 // pred_check
          %p307 = pneg %p156
        $region26: #{lif_scan.1} parent=11 // pred_check_branch
          %309 = sbr.rel (%p307) target = $region28
        $region27: #{lif_scan.1} parent=11 // pred_region
          _
        $region28: #{lif_scan.1} parent=11 // pred_fallthru
          _
        // Predicated region
        $region29: #{lif_scan.1} parent=11 // pred_check
          %p310 = pneg %p177
        $region30: #{lif_scan.1} parent=11 // pred_check_branch
          %312 = sbr.rel (%p310) target = $region32
        $region31: #{lif_scan.1} parent=11 // pred_region
          _
        $region32: #{lif_scan.1} parent=11 // pred_fallthru
          _
        // Predicated region
        $region33: #{lif_scan.1} parent=11 // pred_check
          %p313 = pneg %p198
        $region34: #{lif_scan.1} parent=11 // pred_check_branch
          %315 = sbr.rel (%p313) target = $region36
        $region35: #{lif_scan.1} parent=11 // pred_region
          _
        $region36: #{lif_scan.1} parent=11 // pred_fallthru
          _
        // Predicated region
        $region37: #{lif_scan.1} parent=11 // pred_check
          %p316 = pneg %p219
        $region38: #{lif_scan.1} parent=11 // pred_check_branch
          %318 = sbr.rel (%p316) target = $region40
        $region39: #{lif_scan.1} parent=11 // pred_region
          _
        $region40: #{lif_scan.1} parent=11 // pred_fallthru
          _
      $region12: #{lif_scan.1} parent=5 // pred_fallthru
        _
      %p319 = scmp.lt.s32.totalorder %s22, 8
      // Predicated region
      $region41: #{lif_scan.1} parent=5 // pred_check
        %p320 = pneg %p319
      $region42: #{lif_scan.1} parent=5 // pred_check_branch
        %322 = sbr.rel (%p320) target = $region44
      $region43: #{lif_scan.1} parent=5 // pred_region
        // Predicated region
        $region45: #{lif_scan.1} parent=43 // pred_check
          %p323 = pneg %p56
        $region46: #{lif_scan.1} parent=43 // pred_check_branch
          %325 = sbr.rel (%p323) target = $region48
        $region47: #{lif_scan.1} parent=43 // pred_region
          %p326 = scmp.lt.s32.totalorder %s30, 7
          %s327 = scalar_select %p326, %s30, 7
          %p328 = scmp.lt.s32.totalorder %s29, 0
          %s329 = scalar_select %p328, %s29, 0
          %s330 = sadd.s32 %s329, %s327
          %s331 = smul.addr %s330, 8
          %s332 = scalar_lea.vmem %s0, %s331
        $region48: #{lif_scan.1} parent=43 // pred_fallthru
          _
      $region44: #{lif_scan.1} parent=5 // pred_fallthru
        _
      %p333 = scmp.le.s32.totalorder 1, %s22
      %p334 = scmp.lt.s32.totalorder %s22, 9
      %p335 = pnand %p333, %p334
      %p336 = pneg %p335
      // Predicated region
      $region49: #{lif_scan.1} parent=5 // pred_check
        _
      $region50: #{lif_scan.1} parent=5 // pred_check_branch
        %338 = sbr.rel (%p335) target = $region52
      $region51: #{lif_scan.1} parent=5 // pred_region
        %s339 = ssub.s32 %s22, 1
        %p340 = scmp.lt.s32.totalorder %s32, 7
        %s341 = scalar_select %p340, %s32, 7
        %p342 = scmp.lt.s32.totalorder %s31, 0
        %s343 = scalar_select %p342, %s31, 0
        %s344 = sadd.s32 %s343, %s341
        %s345 = smul.addr %s344, 8
        %s346 = scalar_lea.vmem %s0, %s345
        %p347 = pneg %p62
        %p348 = pneg %p59
        %p349 = scmp.lt.s32.totalorder %s31, 0
        %s350 = scalar_select %p349, %s31, 0
        %s351 = smul.addr %s350, 8
        %s352 = scalar_lea.vmem %s1, %s351
        %p353 = pneg %p88
        %p354 = pneg %p85
        %p355 = scmp.lt.s32.totalorder %s31, 0
        %s356 = scalar_select %p355, %s31, 0
        %s357 = smul.addr %s356, 8
        %s358 = scalar_lea.vmem %s2, %s357
        %p359 = pneg %p114
        %p360 = pneg %p111
        %p361 = pneg %p135
        %p362 = pneg %p132
        %p363 = pneg %p156
        %p364 = pneg %p153
        %p365 = pneg %p177
        %p366 = pneg %p174
        %p367 = pneg %p198
        %p368 = pneg %p195
        %p369 = pneg %p219
        %p370 = pneg %p216
        %p371 = pneg %p247
        %p372 = pneg %p244
        %s373 = sand.u32 %s234, 1
        %s374 = scalar_lea.sflag [#allocation5], %s373
        %s375 = sand.u32 %s234, 1
        %s376 = smul.addr %s375, 8
        %s377 = scalar_lea.vmem [#allocation4], %s376
        %p378 = pneg %p275
        %p379 = pneg %p272
        %s380 = sand.u32 %s262, 1
        %s381 = scalar_lea.sflag [#allocation7], %s380
        %s382 = sand.u32 %s262, 1
        %s383 = smul.addr %s382, 8
        %s384 = scalar_lea.vmem [#allocation6], %s383
        %p385 = scmp.lt.s32.totalorder %s32, 7
        %s386 = scalar_select %p385, %s32, 7
        %p387 = scmp.lt.s32.totalorder %s31, 0
        %s388 = scalar_select %p387, %s31, 0
        %s389 = sadd.s32 %s388, %s386
        %s390 = smul.addr %s389, 8
        %s391 = scalar_lea.vmem %s0, %s390
        %p392 = scmp.lt.s32.totalorder %s31, 0
        %s393 = scalar_select %p392, %s31, 0
        %s394 = smul.addr %s393, 8
        %s395 = scalar_lea.vmem %s1, %s394
        %p396 = scmp.lt.s32.totalorder %s31, 0
        %s397 = scalar_select %p396, %s31, 0
        %s398 = smul.addr %s397, 8
        %s399 = scalar_lea.vmem %s2, %s398
        %p401 = scmp.eq.s32.totalorder %s32, 0
        // Predicated region
        $region53: #{lif_scan.1} parent=51 // pred_check
          %p402 = pneg %p401
        $region54: #{lif_scan.1} parent=51 // pred_check_branch
          %404 = sbr.rel (%p402) target = $region56
        $region55: #{lif_scan.1} parent=51 // pred_region
          %v405 = vld [vmem:[%s395] sm:$0xff]
          %406 = vst [vmem:[#allocation2] sm:$0xff] %v405
          %v407 = vld [vmem:[%s399] sm:$0xff]
          %408 = vst [vmem:[#allocation3] sm:$0xff] %v407
        $region56: #{lif_scan.1} parent=51 // pred_fallthru
          _
        %v409 = vld [vmem:[%s391] sm:$0xff]
        %v410 = vpack.c.bf16 %v409, %v409
        %v411 = vld [vmem:[#allocation3] sm:$0xff]
        %v412 = vpack.c.bf16 %v411, %v411
        %v413 = vld [vmem:[%s3] sm:$0xf]
        %v414 = vld [vmem:[%s3 + $0x4] sm:$0xf]
        %v415 = vld [vmem:[%s3 + $0x8] sm:$0xf]
        %v416 = vld [vmem:[%s3 + $0xc] sm:$0xf]
        %v417 = vld [vmem:[%s3 + $0x10] sm:$0xf]
        %v418 = vld [vmem:[%s3 + $0x14] sm:$0xf]
        %v419 = vld [vmem:[%s3 + $0x18] sm:$0xf]
        %v420 = vld [vmem:[%s3 + $0x1c] sm:$0xf]
        %v421 = vld [vmem:[%s4] sm:$0xf]
        %v422 = vld [vmem:[%s4 + $0x4] sm:$0xf]
        %v423 = vld [vmem:[%s4 + $0x8] sm:$0xf]
        %v424 = vld [vmem:[%s4 + $0xc] sm:$0xf]
        %v425 = vld [vmem:[%s4 + $0x10] sm:$0xf]
        %v426 = vld [vmem:[%s4 + $0x14] sm:$0xf]
        %v427 = vld [vmem:[%s4 + $0x18] sm:$0xf]
        %v428 = vld [vmem:[%s4 + $0x1c] sm:$0xf]
        %v429 = vld [vmem:[%s4 + $0x20] sm:$0xf]
        %v430 = vld [vmem:[%s4 + $0x24] sm:$0xf]
        %v431 = vld [vmem:[%s4 + $0x28] sm:$0xf]
        %v432 = vld [vmem:[%s4 + $0x2c] sm:$0xf]
        %v433 = vld [vmem:[%s4 + $0x30] sm:$0xf]
        %v434 = vld [vmem:[%s4 + $0x34] sm:$0xf]
        %v435 = vld [vmem:[%s4 + $0x38] sm:$0xf]
        %v436 = vld [vmem:[%s4 + $0x3c] sm:$0xf]
        %v453 = vunpack.c.l.b16 %v421
        %v454 = vunpack.c.l.b16 %v422
        %v455 = vunpack.c.l.b16 %v423
        %v456 = vunpack.c.l.b16 %v424
        %v457 = vunpack.c.l.b16 %v425
        %v458 = vunpack.c.l.b16 %v426
        %v459 = vunpack.c.l.b16 %v427
        %v460 = vunpack.c.l.b16 %v428
        %v461 = vunpack.c.l.b16 %v429
        %v462 = vunpack.c.l.b16 %v430
        %v463 = vunpack.c.l.b16 %v431
        %v464 = vunpack.c.l.b16 %v432
        %v465 = vunpack.c.l.b16 %v433
        %v466 = vunpack.c.l.b16 %v434
        %v467 = vunpack.c.l.b16 %v435
        %v468 = vunpack.c.l.b16 %v436
        %v469 = vpack.c.b16 %v454, %v453
        %v470 = vpack.c.b16 %v456, %v455
        %v471 = vpack.c.b16 %v458, %v457
        %v472 = vpack.c.b16 %v460, %v459
        %v473 = vpack.c.b16 %v462, %v461
        %v474 = vpack.c.b16 %v464, %v463
        %v475 = vpack.c.b16 %v466, %v465
        %v476 = vpack.c.b16 %v468, %v467
        %485 = vmatpush.bf16.msra.mxu0 %v476
        %486 = vmatpush.bf16.msra.mxu0 %v475
        %487 = vmatpush.bf16.msra.mxu0 %v474
        %488 = vmatpush.bf16.msra.mxu0 %v473
        %489 = vmatpush.bf16.msra.mxu0 %v472
        %490 = vmatpush.bf16.msra.mxu0 %v471
        %491 = vmatpush.bf16.msra.mxu0 %v470
        %492 = vmatpush.bf16.msra.mxu0 %v469
        %493 = vmatmul.bf16.gmra.mxu0 %v412
        %v494 = vpop.f32.mrf.mxu0
        %v495 = vadd.f32 0.0, %v494
        %v496 = vpop.f32.mrf.mxu0
        %497 = vdwg.mxu0
        %v506 = vunpack.c.l.b16 %v413
        %v507 = vunpack.c.l.b16 %v414
        %v508 = vunpack.c.l.b16 %v415
        %v509 = vunpack.c.l.b16 %v416
        %v510 = vunpack.c.l.b16 %v417
        %v511 = vunpack.c.l.b16 %v418
        %v512 = vunpack.c.l.b16 %v419
        %v513 = vunpack.c.l.b16 %v420
        %v514 = vpack.c.b16 %v507, %v506
        %v515 = vpack.c.b16 %v509, %v508
        %v516 = vpack.c.b16 %v511, %v510
        %v517 = vpack.c.b16 %v513, %v512
        %vm522 = vcmask 523264
        %v524 = vsel %vm522, %v410, 0
        %526 = vmatpush.bf16.msra.mxu0 0
        %527 = vmatpush.bf16.msra.mxu0 0
        %528 = vmatpush.bf16.msra.mxu0 0
        %529 = vmatpush.bf16.msra.mxu0 0
        %530 = vmatpush.bf16.msra.mxu0 %v517
        %531 = vmatpush.bf16.msra.mxu0 %v516
        %532 = vmatpush.bf16.msra.mxu0 %v515
        %533 = vmatpush.bf16.msra.mxu0 %v514
        %534 = vmatmul.bf16.gmra.mxu0 %v524
        %v535 = vpop.f32.mrf.mxu0
        %v536 = vadd.f32 %v495, %v535
        %v537 = vpop.f32.mrf.mxu0
        %538 = vdwg.mxu0
        %v539 = vld [vmem:[%s5] sm:$0x1]
        %v540 = vld [vmem:[#allocation2] sm:$0xff]
        %v542 = vperm.slane %v539, 0
        %v544 = vmul.f32 %v542, %v540
        %v545 = vld [vmem:[%s6] sm:$0x1]
        %v547 = vperm.slane %v545, 0
        %v549 = vmul.f32 %v547, %v536
        %v550 = vadd.f32 %v544, %v549
        %v551 = vld [vmem:[%s7] sm:$0x1]
        %v553 = vperm.slane %v551, 0
        %v555 = vadd.f32 %v550, %v553
        %vm556 = vcmp.gt.f32.partialorder %v555, 1.0
        %v557 = vsel %vm556, 1.0, 0.0
        %v558 = vsel %vm556, 0.0, %v555
        %559 = vst [vmem:[#allocation2] sm:$0xff] %v558
        %560 = vst [vmem:[#allocation3] sm:$0xff] %v557
        %561 = vst [vmem:[%s377] sm:$0xff] %v557
        %562 = vst [vmem:[%s384] sm:$0xff] %v558
        %s563 = sand.u32 %s234, 1
        %s564 = scalar_lea.sflag [#allocation5], %s563
        %s565 = sand.u32 %s234, 1
        %s566 = smul.addr %s565, 8
        %s567 = scalar_lea.vmem [#allocation4], %s566
        %s568 = sand.u32 %s262, 1
        %s569 = scalar_lea.sflag [#allocation7], %s568
        %s570 = sand.u32 %s262, 1
        %s571 = smul.addr %s570, 8
        %s572 = scalar_lea.vmem [#allocation6], %s571
        // Predicated region
        $region57: #{lif_scan.1} parent=51 // pred_check
          %p573 = pneg %p244
        $region58: #{lif_scan.1} parent=51 // pred_check_branch
          %575 = sbr.rel (%p573) target = $region60
        $region59: #{lif_scan.1} parent=51 // pred_region
          %577 = vsyncadd %s564, 0
          %s578 = sadd.s32 %s31, %s32
          %s579 = smul.addr %s578, 8
          %s580 = scalar_lea.hbm %s8, %s579
          %s582 = sshll.u32 %s567, 4
          %s583 = int_to_ptr.vmem [resolvable:$true] %s582
          %s584 = sshll.u32 %s580, 4
          %s585 = int_to_ptr.hbm [resolvable:$true] %s584
          %587 = dma.vmem_to_hbm [thread:$0]  %s583, 128, %s585, %s564
        $region60: #{lif_scan.1} parent=51 // pred_fallthru
          _
        // Predicated region
        $region61: #{lif_scan.1} parent=51 // pred_check
          %p588 = pneg %p272
        $region62: #{lif_scan.1} parent=51 // pred_check_branch
          %590 = sbr.rel (%p588) target = $region64
        $region63: #{lif_scan.1} parent=51 // pred_region
          %592 = vsyncadd %s569, 0
          %s593 = sadd.s32 %s31, %s32
          %s594 = smul.addr %s593, 8
          %s595 = scalar_lea.hbm %s9, %s594
          %s597 = sshll.u32 %s572, 4
          %s598 = int_to_ptr.vmem [resolvable:$true] %s597
          %s599 = sshll.u32 %s595, 4
          %s600 = int_to_ptr.hbm [resolvable:$true] %s599
          %602 = dma.vmem_to_hbm [thread:$0]  %s598, 128, %s600, %s569
        $region64: #{lif_scan.1} parent=51 // pred_fallthru
          _
      $region52: #{lif_scan.1} parent=5 // pred_fallthru
        _
      %p603 = scmp.le.s32.totalorder 2, %s22
      // Predicated region
      $region65: #{lif_scan.1} parent=5 // pred_check
        %p604 = pneg %p603
      $region66: #{lif_scan.1} parent=5 // pred_check_branch
        %606 = sbr.rel (%p604) target = $region68
      $region67: #{lif_scan.1} parent=5 // pred_region
        %s607 = ssub.s32 %s22, 2
        // Predicated region
        $region69: #{lif_scan.1} parent=67 // pred_check
          %p608 = pneg %p250
        $region70: #{lif_scan.1} parent=67 // pred_check_branch
          %610 = sbr.rel (%p608) target = $region72
        $region71: #{lif_scan.1} parent=67 // pred_region
          %s611 = sand.u32 %s235, 1
          %s612 = scalar_lea.sflag [#allocation5], %s611
          %s613 = sand.u32 %s235, 1
          %s614 = smul.addr %s613, 8
          %s615 = scalar_lea.vmem [#allocation4], %s614
          %617 = dma.done %s612, 128
        $region72: #{lif_scan.1} parent=67 // pred_fallthru
          _
        // Predicated region
        $region73: #{lif_scan.1} parent=67 // pred_check
          %p618 = pneg %p278
        $region74: #{lif_scan.1} parent=67 // pred_check_branch
          %620 = sbr.rel (%p618) target = $region76
        $region75: #{lif_scan.1} parent=67 // pred_region
          %s621 = sand.u32 %s263, 1
          %s622 = scalar_lea.sflag [#allocation7], %s621
          %s623 = sand.u32 %s263, 1
          %s624 = smul.addr %s623, 8
          %s625 = scalar_lea.vmem [#allocation6], %s624
          %627 = dma.done %s622, 128
        $region76: #{lif_scan.1} parent=67 // pred_fallthru
          _
      $region68: #{lif_scan.1} parent=5 // pred_fallthru
        _
    $region6: #{lif_scan.1} parent=1 // loop_footer
      %s26 = sadd.s32 1, %s22
    $region7: #{lif_scan.1} parent=1 // loop_footer_branch
      %21 = sbr.rel target = $region3
    $region8: #{lif_scan.1} parent=1 // loop_exit
      _
    %628 = vsyncpa [#allocation5], 1
    %s629 = scalar_lea.sflag [#allocation5], 1
    %630 = vsyncpa %s629, 1
    %631 = vsyncpa [#allocation7], 1
    %s632 = scalar_lea.sflag [#allocation7], 1
    %633 = vsyncpa %s632, 1

</llo_original>
